<compile_context>
chip_gen: v7x
topology: tpu7x:2x2x1
jax: 0.10.0
libtpu: 0.0.40
codegen_flags: <defaults>
</compile_context>

<pallas_src>
import functools
import math

import jax
import jax.numpy as jnp
from jax.experimental import pallas as pl
from jax.experimental.pallas import tpu as pltpu


# ----------------------------------------------------------------------------
# Host-side constants: modified Bessel function of the first kind (series),
# vMF entropy and hyperspherical-uniform entropy -> KL constant.
# ----------------------------------------------------------------------------
def _log_iv(v: float, x: float, n_terms: int = 400) -> float:
    """log I_v(x) via the power series, evaluated in log-space."""
    # TODO(synk): for very large kappa (>> a few hundred) switch to an
    # asymptotic / continued-fraction form; the fixed series truncates there.
    terms = []
    for k in range(n_terms):
        t = (2 * k + v) * math.log(x / 2.0) - math.lgamma(k + 1) - math.lgamma(k + v + 1)
        terms.append(t)
    mx = max(terms)
    return mx + math.log(sum(math.exp(t - mx) for t in terms))


def _vmf_constants(code_dim: int, kappa: float):
    m = float(code_dim)
    k = float(kappa)
    log_iv_h = _log_iv(m / 2.0, k)
    log_iv_hm1 = _log_iv(m / 2.0 - 1.0, k)
    # ive(a,k)/ive(b,k) == iv(a,k)/iv(b,k)  (exp(-k) cancels)
    ratio = math.exp(log_iv_h - log_iv_hm1)
    log_ive_hm1 = log_iv_hm1 - k                      # log ive(m/2-1, kappa)
    log_norm = -((m / 2.0 - 1.0) * math.log(k)
                 - (m / 2.0) * math.log(2.0 * math.pi)
                 - (k + log_ive_hm1))
    entropy_vmf = -k * ratio + log_norm
    dim = code_dim - 1                                 # S^{code_dim-1}
    entropy_unif = (math.log(2.0)
                    + ((dim + 1) / 2.0) * math.log(math.pi)
                    - math.lgamma((dim + 1) / 2.0))
    kld = -entropy_vmf + entropy_unif
    return ratio, kld


# ----------------------------------------------------------------------------
# Pallas kernel: linear -> fused L2-normalize * Bessel-ratio scale.
# One grid step handles one batch tile; W and b stay resident across steps.
# ----------------------------------------------------------------------------
def _vmf_kernel(h_ref, w_ref, b_ref, code_ref, *, ratio, eps, compute_dtype):
    # In-VMEM cast of the h tile (no extra HBM pass; if the caller already
    # supplies bf16 this is a no-op and the h HBM read is halved).
    h = h_ref[...].astype(compute_dtype)               # (TB, D_in)
    w = w_ref[...]                                     # (D_in, N) in compute_dtype
    mu_un = jnp.dot(h, w, preferred_element_type=jnp.float32) + b_ref[...]
    # eps keeps rsqrt finite (also for the garbage rows of a partial final
    # block, which Pallas discards on writeback); differs infinitesimally from
    # torch F.normalize's clamp-denominator semantics.
    inv = jax.lax.rsqrt(jnp.sum(mu_un * mu_un, axis=-1, keepdims=True) + eps)
    code_ref[...] = (mu_un * (ratio * inv)).astype(code_ref.dtype)


def _resident_spec(shape):
    """Single-buffered BlockSpec for a block that never changes across the grid."""
    try:
        return pl.BlockSpec(shape, lambda i: (0, 0), pipeline_mode=pl.Buffered(1))
    except TypeError:  # older jax without pipeline_mode: fall back to default
        return pl.BlockSpec(shape, lambda i: (0, 0))


def _choose_tile_and_vmem(B, d_in, n_out, h_isz, w_isz, out_isz, prefer=512):
    """VMEM-aware batch tile + vmem limit, per chip generation."""
    try:
        vmem_cap = pltpu.get_tpu_info().vmem_capacity_bytes
    except Exception:
        vmem_cap = 64 * 1024 * 1024                    # conservative (v7x) fallback
    # ~60% of physical VMEM: <= ~40 MiB on v7x (64 MiB), ~76 MiB on v5e/v6e (128 MiB).
    budget = min(int(vmem_cap * 0.6), 96 * 1024 * 1024)
    margin = 4 * 1024 * 1024                           # compiler scratch / layout padding
    resident = d_in * n_out * w_isz + n_out * 4        # single-buffered W + b
    per_row = 2 * (d_in * h_isz + n_out * out_isz)     # double-buffered h tile + out tile
    # TODO(synk): if `resident` alone approaches the budget (huge d_in on v7x),
    # add a K grid axis with an f32 accumulator and a pl.when epilogue.
    tb_max = max(8, (budget - resident - margin) // per_row)

    tb = int(min(prefer, tb_max))
    tb = max(8, (tb // 8) * 8)
    if B > 8:
        # v7x megacore: keep >= 2 grid steps so both TensorCores get work.
        half = -(-B // 2)
        tb = min(tb, -(-half // 8) * 8)
    tb = min(tb, max(8, -(-B // 8) * 8))               # no point exceeding the batch
    if B < 8:
        tb = B                                         # block == full dim is allowed
    n_tiles = pl.cdiv(B, tb)

    footprint = resident + per_row * tb + margin
    vmem_limit = int(min(budget, max(footprint, 32 * 1024 * 1024)))
    return tb, n_tiles, vmem_limit


def vmf_code_generator(h, weight, bias, *, kappa, block_b=512, eps=1e-12,
                       compute_dtype=jnp.bfloat16):
    """h: (B, D_in), weight: (D_in, code_dim), bias: (code_dim,).

    Returns (code, kld) matching the PyTorch module in eval mode
    (code = dist.mean, kld = KL(vMF || HypersphericalUniform), shape (B,)).
    """
    B, d_in = h.shape
    code_dim = weight.shape[1]
    ratio, kld_const = _vmf_constants(code_dim, kappa)

    out_dtype = h.dtype
    w_c = weight.astype(compute_dtype)                 # cast once; resident in VMEM
    b_c = bias.astype(jnp.float32).reshape(1, code_dim)

    tb, n_tiles, vmem_limit = _choose_tile_and_vmem(
        B, d_in, code_dim,
        h_isz=h.dtype.itemsize,
        w_isz=w_c.dtype.itemsize,
        out_isz=jnp.dtype(out_dtype).itemsize,
        prefer=block_b)

    kernel = functools.partial(_vmf_kernel, ratio=ratio, eps=eps,
                               compute_dtype=compute_dtype)

    code = pl.pallas_call(
        kernel,
        out_shape=jax.ShapeDtypeStruct((B, code_dim), out_dtype),
        grid_spec=pl.GridSpec(
            grid=(n_tiles,),
            in_specs=[
                pl.BlockSpec((tb, d_in), lambda i: (i, 0)),    # h tile streams (2-buffered)
                _resident_spec((d_in, code_dim)),              # W resident, single-buffered
                _resident_spec((1, code_dim)),                 # b resident, single-buffered
            ],
            # Narrow output written directly (block dim == full dim): no pad, no slice.
            out_specs=pl.BlockSpec((tb, code_dim), lambda i: (i, 0)),
        ),
        compiler_params=pltpu.CompilerParams(
            dimension_semantics=("parallel",),         # shard batch tiles across TCs (v7x)
            vmem_limit_bytes=vmem_limit,
        ),
        cost_estimate=pl.CostEstimate(
            flops=2 * B * d_in * code_dim,
            transcendentals=0,
            bytes_accessed=(B * d_in * h.dtype.itemsize
                            + d_in * code_dim * w_c.dtype.itemsize
                            + code_dim * 4
                            + B * code_dim * jnp.dtype(out_dtype).itemsize),
        ),
    )(h, w_c, b_c)

    # kld is a compile-time constant per row -> no kernel work / no HBM writes.
    kld = jnp.full((B,), kld_const, dtype=jnp.float32)
    return code, kld


if __name__ == "__main__":
    # Small shapes consistent with the module's forward: h is (batch, input_dim).
    # batch=12 exercises both the >=2-tile megacore split and a partial final block.
    batch, input_dim, code_dim, kappa = 12, 32, 16, 10

    key = jax.random.PRNGKey(0)
    k_h, k_w, k_b = jax.random.split(key, 3)
    h = jax.random.normal(k_h, (batch, input_dim), dtype=jnp.float32)
    # Deterministic "nn.Linear" parameters (torch stores (code_dim, input_dim);
    # we keep the transpose so the kernel matmul is h @ W).
    bound = 1.0 / math.sqrt(input_dim)
    weight = jax.random.uniform(k_w, (input_dim, code_dim), jnp.float32, -bound, bound)
    bias = jax.random.uniform(k_b, (code_dim,), jnp.float32, -bound, bound)

    # Reference (pure JAX) forward semantics.
    ratio, kld_const = _vmf_constants(code_dim, kappa)
    pre = h @ weight + bias
    mu_ref = pre / jnp.linalg.norm(pre, axis=-1, keepdims=True)
    code_ref = mu_ref * ratio

    # Exact-parity path (f32 MXU inputs).
    code32, kld32 = vmf_code_generator(h, weight, bias, kappa=kappa,
                                       compute_dtype=jnp.float32)
    jax.block_until_ready((code32, kld32))
    assert code32.shape == (batch, code_dim) and kld32.shape == (batch,)
    assert jnp.allclose(code32, code_ref, atol=1e-5), jnp.max(jnp.abs(code32 - code_ref))
    assert jnp.allclose(kld32, kld_const, atol=1e-5), kld32

    # Default bandwidth-optimized path (bf16 MXU inputs, f32 accumulate/epilogue).
    code, kld = vmf_code_generator(h, weight, bias, kappa=kappa)
    jax.block_until_ready((code, kld))
    assert code.shape == (batch, code_dim) and kld.shape == (batch,)
    assert jnp.allclose(code, code_ref, atol=3e-2), jnp.max(jnp.abs(code - code_ref))
    assert jnp.allclose(jnp.linalg.norm(code.astype(jnp.float32), axis=-1), ratio, atol=3e-2)
    assert jnp.allclose(kld, kld_const, atol=1e-5), kld

    print("KERNEL_OK")
</pallas_src>

<mosaic_0001>
module attributes {stable_mosaic.version = 11 : i64} {
  func.func @_vmf_kernel(%arg0: i32, %arg1: memref<8x32xf32, #tpu.memory_space<vmem>>, %arg2: memref<32x16xf32, #tpu.memory_space<vmem>>, %arg3: memref<1x16xf32, #tpu.memory_space<vmem>>, %arg4: memref<8x16xf32, #tpu.memory_space<vmem>>) attributes {dimension_semantics = [#tpu.dimension_semantics<parallel>], iteration_bounds = array<i64: 2>, scalar_prefetch = 0 : i64, scratch_operands = 0 : i64, tpu.core_type = #tpu.core_type<tc>, window_params = [{transform_indices = @transform_0, window_bounds = array<i64: 8, 32>}, {pipeline_mode = #tpu.pipeline_mode<synchronous>, transform_indices = @transform_1, window_bounds = array<i64: 32, 16>}, {pipeline_mode = #tpu.pipeline_mode<synchronous>, transform_indices = @transform_2, window_bounds = array<i64: 1, 16>}, {transform_indices = @transform_3, window_bounds = array<i64: 8, 16>}]} {
    %c0 = arith.constant 0 : index
    %c0_0 = arith.constant 0 : index
    %0 = vector.load %arg1[%c0, %c0_0] : memref<8x32xf32, #tpu.memory_space<vmem>>, vector<8x32xf32>
    %c0_1 = arith.constant 0 : index
    %c0_2 = arith.constant 0 : index
    %1 = vector.load %arg2[%c0_1, %c0_2] : memref<32x16xf32, #tpu.memory_space<vmem>>, vector<32x16xf32>
    %cst = arith.constant dense<0.000000e+00> : vector<8x16xf32>
    %2 = tpu.matmul %0, %1, %cst {dimension_numbers = #tpu.dot_dimension_numbers<[1], [0], [0], [1], [0, 0, 1, 1], [], []>} : vector<8x32xf32>, vector<32x16xf32>, vector<8x16xf32> -> vector<8x16xf32>
    %c0_3 = arith.constant 0 : index
    %c0_4 = arith.constant 0 : index
    %3 = vector.load %arg3[%c0_3, %c0_4] : memref<1x16xf32, #tpu.memory_space<vmem>>, vector<1x16xf32>
    %4 = vector.broadcast %3 : vector<1x16xf32> to vector<8x16xf32>
    %5 = arith.addf %2, %4 : vector<8x16xf32>
    %6 = arith.mulf %5, %5 : vector<8x16xf32>
    %cst_5 = arith.constant dense<0.000000e+00> : vector<8xf32>
    %7 = vector.multi_reduction <add>, %6, %cst_5 [1] : vector<8x16xf32> to vector<8xf32>
    %8 = vector.shape_cast %7 : vector<8xf32> to vector<8x1xf32>
    %cst_6 = arith.constant 9.99999996E-13 : f32
    %9 = vector.broadcast %cst_6 : f32 to vector<8x1xf32>
    %10 = arith.addf %8, %9 : vector<8x1xf32>
    %11 = math.rsqrt %10 : vector<8x1xf32>
    %cst_7 = arith.constant 0.487621665 : f32
    %12 = vector.broadcast %cst_7 : f32 to vector<8x1xf32>
    %13 = arith.mulf %12, %11 : vector<8x1xf32>
    %14 = vector.broadcast %13 : vector<8x1xf32> to vector<8x16xf32>
    %15 = arith.mulf %5, %14 : vector<8x16xf32>
    %c0_8 = arith.constant 0 : index
    %c0_9 = arith.constant 0 : index
    %16 = vector.load %arg4[%c0_8, %c0_9] : memref<8x16xf32, #tpu.memory_space<vmem>>, vector<8x16xf32>
    tpu.vector_store %arg4[%c0_8, %c0_9], %15 {strides = array<i32>} : memref<8x16xf32, #tpu.memory_space<vmem>>, vector<8x16xf32>,
    return
  }
  func.func @transform_0(%arg0: i32) -> (i32, i32) {
    %c0_i32 = arith.constant 0 : i32
    %c0_i32_0 = arith.constant 0 : i32
    return %arg0, %c0_i32 : i32, i32
  }
  func.func @transform_1(%arg0: i32) -> (i32, i32) {
    %c0_i32 = arith.constant 0 : i32
    %c0_i32_0 = arith.constant 0 : i32
    %c0_i32_1 = arith.constant 0 : i32
    return %c0_i32, %c0_i32_0 : i32, i32
  }
  func.func @transform_2(%arg0: i32) -> (i32, i32) {
    %c0_i32 = arith.constant 0 : i32
    %c0_i32_0 = arith.constant 0 : i32
    %c0_i32_1 = arith.constant 0 : i32
    return %c0_i32, %c0_i32_0 : i32, i32
  }
  func.func @transform_3(%arg0: i32) -> (i32, i32) {
    %c0_i32 = arith.constant 0 : i32
    %c0_i32_0 = arith.constant 0 : i32
    return %arg0, %c0_i32 : i32, i32
  }
}

</mosaic_0001>

<llo_original>
// kernel: tpu_custom_call.1
$region0: #{tpu_custom_call.1}
  #allocation0 [shape = 'u32[]', space=smem, size = 0x4, offset = 0x4, fixed_abs, tag = 'smem constant byte address 0x4 - core index']
  #allocation1 [shape = 'u32[144,128]{1,0:T(1,128)}', space=vmem, size = 0x12000, scoped, tag = 'internal scratch']
  %s0 = inlined_call_operand.vmem [shape: f32[12,32], index: 0, kind: input, shape index: {}]
  %s1 = inlined_call_operand.vmem [shape: f32[32,16], index: 1, kind: input, shape index: {}]
  %s2 = inlined_call_operand.vmem [shape: f32[1,16], index: 2, kind: input, shape index: {}]
  %s3 = inlined_call_operand.hbm [shape: f32[12,16], index: 3, kind: output, shape index: {}]
  %s4 = sld [smem:[#allocation0]]
  $region45: #{tpu_custom_call.1} parent=0
    _
  %s6 = ssub.s32 1, %s4
  %s7 = scalar_select 0, %s6, %s4
  $region1: #{tpu_custom_call.1} parent=0
    #allocation2 [shape = 'u8[8192]{0}', space=vmem, size = 0x2000, scoped, tag = 'output window, operand 0']
    #allocation3 [shape = 's32[2]{0}', space=sflag, size = 0x8, scoped, tag = 'scoped memory for tpu_custom_call.1']
    %8 = vsyncpa [#allocation3], 0
    %s9 = scalar_lea.sflag [#allocation3], 1
    %10 = vsyncpa %s9, 0
    loop: start=0, step=1, limit=4
    $region2: #{tpu_custom_call.1} parent=1 // loop_pre_header
      _
    $region3: #{tpu_custom_call.1} parent=1 // loop_header
      %s12 = sphi 0, %s16
      %p13 = scmp.ge.s32.totalorder %s12, 4
      %s22 = sphi 0, %s24
      %s25 = sphi 0, %s22
      %s26 = sphi 0, %s25
      %s42 = sphi 0, %s26
      %s46 = sphi 0, %s46
      %s48 = sphi 0, %s46
      %s49 = sphi 0, %s48
      %s63 = sphi 0, %s49
      %s67 = sphi 0, %s67
      %s69 = sphi 0, %s67
      %s70 = sphi 0, %s69
      %s84 = sphi 0, %s70
      %s90 = sphi 0, %s92
      %s93 = sphi 0, %s90
      %s94 = sphi 0, %s93
      %s110 = sphi 0, %s94
    $region4: #{tpu_custom_call.1} parent=1 // loop_header_branch
      %15 = sbr.rel (%p13) target = $region8
    $region5: #{tpu_custom_call.1} parent=1 // loop_body
      %s17 = ssub.s32 %s12, 1
      %s18 = ssub.s32 %s12, 2
      %s19 = sadd.s32 %s12, 1
      %s20 = ssub.s32 %s12, %s19
      %p21 = scmp.eq.s32.totalorder %s20, 0
      %s23 = sadd.s32 %s22, 1
      %s24 = scalar_select %p21, %s22, %s23
      %p27 = pneg %p21
      %p28 = scmp.eq.s32.totalorder %s12, 1
      %p29 = por %p27, %p28
      %p30 = scmp.ne.s32.totalorder %s22, %s25
      %p31 = scmp.eq.s32.totalorder %s12, 0
      %p32 = por %p30, %p31
      %p33 = scmp.ne.s32.totalorder %s22, %s25
      %p34 = scmp.eq.s32.totalorder %s17, 1
      %p35 = por %p33, %p34
      %p36 = scmp.ne.s32.totalorder %s25, %s26
      %p37 = scmp.eq.s32.totalorder %s17, 0
      %p38 = por %p36, %p37
      %p39 = scmp.ne.s32.totalorder %s25, %s26
      %p40 = scmp.eq.s32.totalorder %s18, 1
      %p41 = por %p39, %p40
      %p43 = scmp.ne.s32.totalorder %s26, %s42
      %p44 = scmp.eq.s32.totalorder %s18, 0
      %p45 = por %p43, %p44
      %s47 = sadd.s32 %s46, 1
      %p50 = scmp.eq.s32.totalorder %s12, 1
      %p51 = scmp.ne.s32.totalorder %s46, %s48
      %p52 = scmp.eq.s32.totalorder %s12, 0
      %p53 = por %p51, %p52
      %p54 = scmp.ne.s32.totalorder %s46, %s48
      %p55 = scmp.eq.s32.totalorder %s17, 1
      %p56 = por %p54, %p55
      %p57 = scmp.ne.s32.totalorder %s48, %s49
      %p58 = scmp.eq.s32.totalorder %s17, 0
      %p59 = por %p57, %p58
      %p60 = scmp.ne.s32.totalorder %s48, %s49
      %p61 = scmp.eq.s32.totalorder %s18, 1
      %p62 = por %p60, %p61
      %p64 = scmp.ne.s32.totalorder %s49, %s63
      %p65 = scmp.eq.s32.totalorder %s18, 0
      %p66 = por %p64, %p65
      %s68 = sadd.s32 %s67, 1
      %p71 = scmp.eq.s32.totalorder %s12, 1
      %p72 = scmp.ne.s32.totalorder %s67, %s69
      %p73 = scmp.eq.s32.totalorder %s12, 0
      %p74 = por %p72, %p73
      %p75 = scmp.ne.s32.totalorder %s67, %s69
      %p76 = scmp.eq.s32.totalorder %s17, 1
      %p77 = por %p75, %p76
      %p78 = scmp.ne.s32.totalorder %s69, %s70
      %p79 = scmp.eq.s32.totalorder %s17, 0
      %p80 = por %p78, %p79
      %p81 = scmp.ne.s32.totalorder %s69, %s70
      %p82 = scmp.eq.s32.totalorder %s18, 1
      %p83 = por %p81, %p82
      %p85 = scmp.ne.s32.totalorder %s70, %s84
      %p86 = scmp.eq.s32.totalorder %s18, 0
      %p87 = por %p85, %p86
      %s88 = ssub.s32 %s12, %s19
      %p89 = scmp.eq.s32.totalorder %s88, 0
      %s91 = sadd.s32 %s90, 1
      %s92 = scalar_select %p89, %s90, %s91
      %p95 = pneg %p89
      %p96 = scmp.eq.s32.totalorder %s12, 1
      %p97 = por %p95, %p96
      %p98 = scmp.ne.s32.totalorder %s90, %s93
      %p99 = scmp.eq.s32.totalorder %s12, 0
      %p100 = por %p98, %p99
      %p101 = scmp.ne.s32.totalorder %s90, %s93
      %p102 = scmp.eq.s32.totalorder %s17, 1
      %p103 = por %p101, %p102
      %p104 = scmp.ne.s32.totalorder %s93, %s94
      %p105 = scmp.eq.s32.totalorder %s17, 0
      %p106 = por %p104, %p105
      %p107 = scmp.ne.s32.totalorder %s93, %s94
      %p108 = scmp.eq.s32.totalorder %s18, 1
      %p109 = por %p107, %p108
      %p111 = scmp.ne.s32.totalorder %s94, %s110
      %p112 = scmp.eq.s32.totalorder %s18, 0
      %p113 = por %p111, %p112
      %p114 = scmp.le.s32.totalorder 1, %s12
      %p115 = scmp.lt.s32.totalorder %s12, 3
      %p116 = pnand %p114, %p115
      %p117 = pneg %p116
      // Predicated region
      $region9: #{tpu_custom_call.1} parent=5 // pred_check
        _
      $region10: #{tpu_custom_call.1} parent=5 // pred_check_branch
        %119 = sbr.rel (%p116) target = $region12
      $region11: #{tpu_custom_call.1} parent=5 // pred_region
        %s120 = ssub.s32 %s12, 1
        // Predicated region
        $region13: #{tpu_custom_call.1} parent=11 // pred_check
          %p121 = pneg %p59
        $region14: #{tpu_custom_call.1} parent=11 // pred_check_branch
          %123 = sbr.rel (%p121) target = $region16
        $region15: #{tpu_custom_call.1} parent=11 // pred_region
          _
        $region16: #{tpu_custom_call.1} parent=11 // pred_fallthru
          _
        // Predicated region
        $region17: #{tpu_custom_call.1} parent=11 // pred_check
          %p124 = pneg %p80
        $region18: #{tpu_custom_call.1} parent=11 // pred_check_branch
          %126 = sbr.rel (%p124) target = $region20
        $region19: #{tpu_custom_call.1} parent=11 // pred_region
          _
        $region20: #{tpu_custom_call.1} parent=11 // pred_fallthru
          _
      $region12: #{tpu_custom_call.1} parent=5 // pred_fallthru
        _
      %p127 = scmp.lt.s32.totalorder %s12, 2
      // Predicated region
      $region21: #{tpu_custom_call.1} parent=5 // pred_check
        %p128 = pneg %p127
      $region22: #{tpu_custom_call.1} parent=5 // pred_check_branch
        %130 = sbr.rel (%p128) target = $region24
      $region23: #{tpu_custom_call.1} parent=5 // pred_region
        // Predicated region
        $region25: #{tpu_custom_call.1} parent=23 // pred_check
          %p131 = pneg %p32
        $region26: #{tpu_custom_call.1} parent=23 // pred_check_branch
          %133 = sbr.rel (%p131) target = $region28
        $region27: #{tpu_custom_call.1} parent=23 // pred_region
          %p134 = scmp.lt.s32.totalorder %s12, 1
          %s135 = scalar_select %p134, %s12, 1
          %s136 = smul.addr %s135, 8
          %s137 = scalar_lea.vmem %s0, %s136
        $region28: #{tpu_custom_call.1} parent=23 // pred_fallthru
          _
      $region24: #{tpu_custom_call.1} parent=5 // pred_fallthru
        _
      %p138 = scmp.le.s32.totalorder 1, %s12
      %p139 = scmp.lt.s32.totalorder %s12, 3
      %p140 = pnand %p138, %p139
      %p141 = pneg %p140
      // Predicated region
      $region29: #{tpu_custom_call.1} parent=5 // pred_check
        _
      $region30: #{tpu_custom_call.1} parent=5 // pred_check_branch
        %143 = sbr.rel (%p140) target = $region32
      $region31: #{tpu_custom_call.1} parent=5 // pred_region
        %s144 = ssub.s32 %s12, 1
        %p145 = scmp.lt.s32.totalorder %s17, 1
        %s146 = scalar_select %p145, %s17, 1
        %s147 = smul.addr %s146, 8
        %s148 = scalar_lea.vmem %s0, %s147
        %p149 = pneg %p38
        %p150 = pneg %p35
        %p151 = pneg %p59
        %p152 = pneg %p56
        %p153 = pneg %p80
        %p154 = pneg %p77
        %p155 = pneg %p106
        %p156 = pneg %p103
        %s157 = sand.u32 %s93, 1
        %s158 = scalar_lea.sflag [#allocation3], %s157
        %s159 = sand.u32 %s93, 1
        %s160 = smul.addr %s159, 8
        %s161 = scalar_lea.vmem [#allocation2], %s160
        %p162 = scmp.lt.s32.totalorder %s17, 1
        %s163 = scalar_select %p162, %s17, 1
        %s164 = smul.addr %s163, 8
        %s165 = scalar_lea.vmem %s0, %s164
        %v166 = vld [vmem:[%s165] sm:$0xff]
        %v167 = vld [vmem:[%s1] sm:$0xff]
        %v168 = vld [vmem:[%s1 + $0x8] sm:$0xff]
        %v169 = vld [vmem:[%s1 + $0x10] sm:$0xff]
        %v170 = vld [vmem:[%s1 + $0x18] sm:$0xff]
        %v171 = vld [vmem:[%s2] sm:$0x1]
        %v173 = vlaneseq
        %v174 = vshrl.u32 %v173, 7
        %v175 = vsub.s32 0, %v174
        %v176 = vrot.slane %v171, %v175
        %vm178 = vcmask 261120
        %v180 = vsel %vm178, %v166, 0
        %182 = vmatprep.subr.mxu0 0.0
        %183 = vmatpush1.msra.mxu0 %v167
        %184 = vmatprep.subr.mxu0 0.0
        %185 = vmatpush1.msra.mxu0 %v168
        %186 = vmatprep.subr.mxu0 0.0
        %187 = vmatpush1.msra.mxu0 %v169
        %188 = vmatprep.subr.mxu0 0.0
        %189 = vmatpush1.msra.mxu0 %v170
        %190 = vmatprep.subr.mxu0 0.0
        %191 = vmatpush1.msra.mxu0 0.0
        %192 = vmatprep.subr.mxu0 0.0
        %193 = vmatpush1.msra.mxu0 0.0
        %194 = vmatprep.subr.mxu0 0.0
        %195 = vmatpush1.msra.mxu0 0.0
        %196 = vmatprep.subr.mxu0 0.0
        %197 = vmatpush1.msra.mxu0 0.0
        %198 = vmatprep.subr.mxu0 0.0
        %199 = vmatpush1.msra.mxu0 0.0
        %200 = vmatprep.subr.mxu0 0.0
        %201 = vmatpush1.msra.mxu0 0.0
        %202 = vmatprep.subr.mxu0 0.0
        %203 = vmatpush1.msra.mxu0 0.0
        %204 = vmatprep.subr.mxu0 0.0
        %205 = vmatpush1.msra.mxu0 0.0
        %206 = vmatprep.subr.mxu0 0.0
        %207 = vmatpush1.msra.mxu0 0.0
        %208 = vmatprep.subr.mxu0 0.0
        %209 = vmatpush1.msra.mxu0 0.0
        %210 = vmatprep.subr.mxu0 0.0
        %211 = vmatpush1.msra.mxu0 0.0
        %212 = vmatprep.subr.mxu0 0.0
        %213 = vmatpush1.msra.mxu0 0.0
        %214 = vmatprep.subr.mxu0 0.0
        %215 = vmatpush1.msra.mxu0 0.0
        %216 = vmatprep.subr.mxu0 0.0
        %217 = vmatpush1.msra.mxu0 0.0
        %218 = vmatprep.subr.mxu0 0.0
        %219 = vmatpush1.msra.mxu0 0.0
        %220 = vmatprep.subr.mxu0 0.0
        %221 = vmatpush1.msra.mxu0 0.0
        %222 = vmatprep.subr.mxu0 0.0
        %223 = vmatpush1.msra.mxu0 0.0
        %224 = vmatprep.subr.mxu0 0.0
        %225 = vmatpush1.msra.mxu0 0.0
        %226 = vmatprep.subr.mxu0 0.0
        %227 = vmatpush1.msra.mxu0 0.0
        %228 = vmatprep.subr.mxu0 0.0
        %229 = vmatpush1.msra.mxu0 0.0
        %230 = vmatprep.subr.mxu0 0.0
        %231 = vmatpush1.msra.mxu0 0.0
        %232 = vmatprep.subr.mxu0 0.0
        %233 = vmatpush1.msra.mxu0 0.0
        %234 = vmatprep.subr.mxu0 0.0
        %235 = vmatpush1.msra.mxu0 0.0
        %236 = vmatprep.subr.mxu0 0.0
        %237 = vmatpush1.msra.mxu0 0.0
        %238 = vmatprep.subr.mxu0 0.0
        %239 = vmatpush1.msra.mxu0 0.0
        %240 = vmatprep.subr.mxu0 0.0
        %241 = vmatpush1.msra.mxu0 0.0
        %242 = vmatprep.subr.mxu0 0.0
        %243 = vmatpush1.msra.mxu0 0.0
        %244 = vmatprep.subr.mxu0 0.0
        %245 = vmatpush1.msra.mxu0 0.0
        %246 = vmatprep.mubr.f32.mxu0 0.0
        %247 = vmatmul.mubr.f32.gmra.mrb[0].mxu0 %v180
        %v248 = vpop.f32.mrb[0].mxu0
        %v249 = vadd.f32 %v176, %v248
        %v250 = vpop.f32.mrb[0].mxu0
        %251 = vdwg.mxu0
        %v252 = vmul.f32 %v249, %v249
        %vm253 = vcmask 130048
        %v254 = vsel %vm253, %v252, 0.0
        %255 = vadd.xlane.f32.xlu0 %v254
        %v256 = vpop.xlane.xlu0 %255
        %v257 = vadd.f32 %v256, 1e-12
        %v258 = vrsqrt.pop %v257
        %v259 = vmul.f32 %v258, 0.48762167
        %v260 = vmul.f32 %v249, %v259
        %261 = vst.msk [vmem:[%s161] sm:$0xff] %vm253, %v260
        %s262 = sand.u32 %s93, 1
        %s263 = scalar_lea.sflag [#allocation3], %s262
        %s264 = sand.u32 %s93, 1
        %s265 = smul.addr %s264, 8
        %s266 = scalar_lea.vmem [#allocation2], %s265
        // Predicated region
        $region33: #{tpu_custom_call.1} parent=31 // pred_check
          %p267 = pneg %p103
        $region34: #{tpu_custom_call.1} parent=31 // pred_check_branch
          %269 = sbr.rel (%p267) target = $region36
        $region35: #{tpu_custom_call.1} parent=31 // pred_region
          %s271 = ssub.s32 128, 128
          %272 = vsyncadd %s263, %s271
          %s273 = smul.addr %s17, 128
          %s274 = scalar_lea.hbm %s3, %s273
          %s276 = sshll.u32 %s266, 4
          %s277 = int_to_ptr.vmem [resolvable:$true] %s276
          %279 = dma.vmem_to_hbm [thread:$0]  %s277, 128, %s274, %s263
        $region36: #{tpu_custom_call.1} parent=31 // pred_fallthru
          _
      $region32: #{tpu_custom_call.1} parent=5 // pred_fallthru
        _
      %p280 = scmp.le.s32.totalorder 2, %s12
      // Predicated region
      $region37: #{tpu_custom_call.1} parent=5 // pred_check
        %p281 = pneg %p280
      $region38: #{tpu_custom_call.1} parent=5 // pred_check_branch
        %283 = sbr.rel (%p281) target = $region40
      $region39: #{tpu_custom_call.1} parent=5 // pred_region
        %s284 = ssub.s32 %s12, 2
        // Predicated region
        $region41: #{tpu_custom_call.1} parent=39 // pred_check
          %p285 = pneg %p109
        $region42: #{tpu_custom_call.1} parent=39 // pred_check_branch
          %287 = sbr.rel (%p285) target = $region44
        $region43: #{tpu_custom_call.1} parent=39 // pred_region
          %s288 = sand.u32 %s94, 1
          %s289 = scalar_lea.sflag [#allocation3], %s288
          %s290 = sand.u32 %s94, 1
          %s291 = smul.addr %s290, 8
          %s292 = scalar_lea.vmem [#allocation2], %s291
          %293 = dma.done %s289, 128
        $region44: #{tpu_custom_call.1} parent=39 // pred_fallthru
          _
      $region40: #{tpu_custom_call.1} parent=5 // pred_fallthru
        _
    $region6: #{tpu_custom_call.1} parent=1 // loop_footer
      %s16 = sadd.s32 1, %s12
    $region7: #{tpu_custom_call.1} parent=1 // loop_footer_branch
      %11 = sbr.rel target = $region3
    $region8: #{tpu_custom_call.1} parent=1 // loop_exit
      _
    %294 = vsyncpa [#allocation3], 1
    %s295 = scalar_lea.sflag [#allocation3], 1
    %296 = vsyncpa %s295, 1

</llo_original>
